<compile_context>
chip_gen: v6e
topology: v6e:2x2x1
jax: 0.10.0
libtpu: 0.0.40
codegen_flags: <defaults>
</compile_context>

<pallas_src>
import functools
import math

import jax
import jax.numpy as jnp
import numpy as np
from jax.experimental import pallas as pl
from jax.experimental.pallas import tpu as pltpu


# --------------------------------------------------------------------------
# Tiny cached host-side constants / probes.
# --------------------------------------------------------------------------
@functools.lru_cache(maxsize=None)
def _tap_masks(N, Hp, Wp):
    """(9, N*Hp*Wp) 0/1 masks: which output positions have an in-bounds
    neighbour for each of the 9 conv taps (zero padding elsewhere)."""
    h = np.arange(Hp)[:, None]
    w = np.arange(Wp)[None, :]
    rows = []
    for dh in (-1, 0, 1):
        for dw in (-1, 0, 1):
            valid = ((h + dh >= 0) & (h + dh < Hp) &
                     (w + dw >= 0) & (w + dw < Wp))
            rows.append(np.tile(valid.reshape(-1), N))
    return np.stack(rows).astype(np.float32)


@functools.lru_cache(maxsize=None)
def _roll_is_np_convention():
    """One-time probe of pltpu.roll's shift direction (np.roll-style expected:
    out[i] = in[i - shift]).  Keeps the tap shifts correct either way."""
    def probe(x_ref, o_ref):
        o_ref[...] = pltpu.roll(x_ref[...], 1, 1)

    x = jnp.tile(jnp.arange(128, dtype=jnp.float32)[None, :], (8, 1))
    y = pl.pallas_call(
        probe, out_shape=jax.ShapeDtypeStruct((8, 128), jnp.float32))(x)
    return bool(np.asarray(y)[0, 0] == 127.0)


# --------------------------------------------------------------------------
# Fused Down kernel: maxpool -> conv3x3 -> BN/ReLU -> conv3x3 -> BN/ReLU.
# Activations are (C, N*Hp*Wp) slabs: channels on sublanes, raster on lanes.
# --------------------------------------------------------------------------
def _make_down_kernel(N, Hp, Wp):
    HW = Hp * Wp
    L = N * HW                               # lanes: flat (n, h, w) raster
    inv_cnt = 1.0 / float(L)
    TAPS = [(dh, dw) for dh in (-1, 0, 1) for dw in (-1, 0, 1)]
    # tap_t[pos] = a[pos + dh*Wp + dw]; under np.roll convention that is a
    # rotate by -(dh*Wp + dw) (mod L).  Lane positions that wrap across a row
    # or an image boundary are exactly the out-of-bounds taps and are zeroed
    # by the boundary masks, so rolling the whole batched slab is safe.
    sgn = -1 if _roll_is_np_convention() else 1
    SHIFTS = [(sgn * (dh * Wp + dw)) % L for dh, dw in TAPS]

    def kernel(xq_ref, mask_ref, w1_ref, w2_ref, g_ref, beta_ref, o_ref):
        # ---------------- MaxPool2d(2, 2) --------------------------------
        # xq holds the four 2x2-quadrant slabs -> the pool is 3 elementwise
        # maxes on the VPU (no gather, no selection matmul).
        xq = xq_ref[...]                                     # (4, Cin, L)
        pooled = jnp.maximum(jnp.maximum(xq[0], xq[1]),
                             jnp.maximum(xq[2], xq[3]))      # (Cin, L)

        masks = mask_ref[...]                                # (9, L) 0/1
        tap_masks = [masks[t:t + 1, :] for t in range(9)]    # (1, L) each

        # ------------ 3x3 same-conv: rolls + masks + ONE batched matmul --
        def conv3x3(a, w_ref):
            taps = []
            for t, (dh, dw) in enumerate(TAPS):
                if dh == 0 and dw == 0:
                    taps.append(a)                           # centre tap: no shift/mask
                else:
                    taps.append(pltpu.roll(a, SHIFTS[t], 1) * tap_masks[t])
            patches = jnp.concatenate(taps, axis=0)          # (9*C, L), tap-major
            return jnp.dot(w_ref[...], patches,
                           preferred_element_type=jnp.float32)   # (Cout, L)

        # -------- shared BatchNorm2d (batch statistics) + ReLU, one pass --
        def bn_relu(y):
            mean = jnp.sum(y, axis=1, keepdims=True) * inv_cnt
            var = jnp.sum(y * y, axis=1, keepdims=True) * inv_cnt - mean * mean
            scale = jax.lax.rsqrt(var + 1e-5) * g_ref[...]
            shift = beta_ref[...] - mean * scale
            return jnp.maximum(y * scale + shift, 0.0)

        a1 = bn_relu(conv3x3(pooled, w1_ref))
        o_ref[...] = bn_relu(conv3x3(a1, w2_ref))

    return kernel


# --------------------------------------------------------------------------
# Down.forward wrapper (NCHW in / NCHW out; only layout plumbing in XLA).
# --------------------------------------------------------------------------
def down_forward(params, x):
    """x: (N, Cin, H, W) f32  ->  (N, Cout, H/2, W/2) f32."""
    N, Cin, H, W = x.shape
    Cout = params["conv1_w"].shape[-1]
    Hp, Wp = H // 2, W // 2
    L = N * Hp * Wp

    def im2col_w(w_hwio):          # (3,3,Ci,Co) -> (Co, 9*Ci), tap-major columns
        co = w_hwio.shape[-1]
        return jnp.transpose(w_hwio, (3, 0, 1, 2)).reshape(co, -1)

    # Layout plumbing only: de-interleave the 2x2 pooling windows into four
    # lane-dense quadrant slabs (channels -> sublanes, (n, h, w) raster -> lanes).
    xq = jnp.transpose(x.reshape(N, Cin, Hp, 2, Wp, 2),
                       (3, 5, 1, 0, 2, 4)).reshape(4, Cin, L)

    args = (
        xq,                                        # (4, Cin, L)
        jnp.asarray(_tap_masks(N, Hp, Wp)),        # (9, L) boundary masks
        im2col_w(params["conv1_w"]),               # (Cout, 9*Cin)
        im2col_w(params["conv2_w"]),               # (Cout, 9*Cout)
        params["bn_gamma"].reshape(Cout, 1),
        params["bn_beta"].reshape(Cout, 1),
        # conv biases intentionally not passed: they cancel under batch-stat BN.
    )

    out_flat = pl.pallas_call(
        _make_down_kernel(N, Hp, Wp),
        out_shape=jax.ShapeDtypeStruct((Cout, L), jnp.float32),
    )(*args)

    # back to NCHW
    return jnp.transpose(out_flat.reshape(Cout, N, Hp, Wp), (1, 0, 2, 3))


# --------------------------------------------------------------------------
# Pure-JAX reference (same math as the PyTorch module, including conv biases).
# --------------------------------------------------------------------------
def ref_forward(params, x):
    xp = jax.lax.reduce_window(x, -jnp.inf, jax.lax.max,
                               (1, 1, 2, 2), (1, 1, 2, 2), "VALID")

    def conv(z, w, b):
        y = jax.lax.conv_general_dilated(
            z, w, (1, 1), ((1, 1), (1, 1)),
            dimension_numbers=("NCHW", "HWIO", "NCHW"))
        return y + b[None, :, None, None]

    def bn_relu(z, g, b):
        mean = jnp.mean(z, axis=(0, 2, 3), keepdims=True)
        var = jnp.mean((z - mean) ** 2, axis=(0, 2, 3), keepdims=True)
        y = (z - mean) * jax.lax.rsqrt(var + 1e-5)
        y = y * g[None, :, None, None] + b[None, :, None, None]
        return jnp.maximum(y, 0.0)

    y = conv(xp, params["conv1_w"], params["conv1_b"])
    y = bn_relu(y, params["bn_gamma"], params["bn_beta"])
    y = conv(y, params["conv2_w"], params["conv2_b"])
    y = bn_relu(y, params["bn_gamma"], params["bn_beta"])
    return y


if __name__ == "__main__":
    key = jax.random.PRNGKey(0)
    In, Out = 4, 8                       # Down(In=4, Out=8)
    N, H, W = 2, 16, 16

    ks = jax.random.split(key, 5)

    def uinit(k, shape, fan_in):
        bound = 1.0 / math.sqrt(fan_in)
        return jax.random.uniform(k, shape, jnp.float32, -bound, bound)

    params = {
        # DoubleConv.conv1: Conv2d(In, Out, 3, 1, 1)  (HWIO layout)
        "conv1_w": uinit(ks[0], (3, 3, In, Out), In * 9),
        "conv1_b": uinit(ks[1], (Out,), In * 9),
        # DoubleConv.conv2: Conv2d(Out, Out, 3, 1, 1)
        "conv2_w": uinit(ks[2], (3, 3, Out, Out), Out * 9),
        "conv2_b": uinit(ks[3], (Out,), Out * 9),
        # DoubleConv.norm: BatchNorm2d(Out) affine params (PyTorch defaults 1/0)
        "bn_gamma": jnp.ones((Out,), jnp.float32),
        "bn_beta": jnp.zeros((Out,), jnp.float32),
    }

    x = jax.random.normal(ks[4], (N, In, H, W), jnp.float32)   # (2, 4, 16, 16)

    out = jax.block_until_ready(down_forward(params, x))
    assert out.shape == (N, Out, H // 2, W // 2)

    ref = jax.block_until_ready(ref_forward(params, x))
    np.testing.assert_allclose(np.asarray(out), np.asarray(ref),
                               atol=1e-3, rtol=1e-3)

    print("KERNEL_OK")
</pallas_src>

<mosaic_0001>
module attributes {stable_mosaic.version = 11 : i64} {
  func.func @probe(%arg0: memref<8x128xf32, #tpu.memory_space<vmem>>, %arg1: memref<8x128xf32, #tpu.memory_space<vmem>>) attributes {dimension_semantics = [], scalar_prefetch = 0 : i64, scratch_operands = 0 : i64, tpu.core_type = #tpu.core_type<tc>} {
    %c0 = arith.constant 0 : index
    %c0_0 = arith.constant 0 : index
    %0 = vector.load %arg0[%c0, %c0_0] : memref<8x128xf32, #tpu.memory_space<vmem>>, vector<8x128xf32>
    %c1_i32 = arith.constant 1 : i32
    %1 = tpu.dynamic_rotate %0 by %c1_i32 dim 1 : vector<8x128xf32>, i32 -> vector<8x128xf32>
    %c0_1 = arith.constant 0 : index
    %c0_2 = arith.constant 0 : index
    %2 = vector.load %arg1[%c0_1, %c0_2] : memref<8x128xf32, #tpu.memory_space<vmem>>, vector<8x128xf32>
    tpu.vector_store %arg1[%c0_1, %c0_2], %1 {strides = array<i32>} : memref<8x128xf32, #tpu.memory_space<vmem>>, vector<8x128xf32>,
    return
  }
}

</mosaic_0001>

<llo_original>
// kernel: tpu_custom_call.1
$region0: #{tpu_custom_call.1}
  #allocation0 [shape = 'u32[]', space=smem, size = 0x4, offset = 0x4, fixed_abs, tag = 'smem constant byte address 0x4 - core index']
  #allocation1 [shape = 'u32[144,128]{1,0:T(1,128)}', space=vmem, size = 0x12000, scoped, tag = 'internal scratch']
  %s0 = inlined_call_operand.hbm [shape: f32[8,128], index: 0, kind: input, shape index: {}]
  %s1 = inlined_call_operand.hbm [shape: f32[8,128], index: 1, kind: output, shape index: {}]
  %s2 = sld [smem:[#allocation0]]
  $region18: #{tpu_custom_call.1} parent=0
    _
  %s4 = ssub.s32 1, %s2
  %s5 = scalar_select 0, %s4, %s2
  $region1: #{tpu_custom_call.1} parent=0
    #allocation2 [shape = 'u8[4096]{0}', space=vmem, size = 0x1000, scoped, tag = 'input window, operand 0, single buffered']
    #allocation3 [shape = 's32[1]{0}', space=sflag, size = 0x4, scoped, tag = 'scoped memory for tpu_custom_call.1']
    #allocation4 [shape = 's32[1]{0}', space=sflag, size = 0x4, scoped, tag = 'scoped memory for tpu_custom_call.1']
    #allocation5 [shape = 'u8[4096]{0}', space=vmem, size = 0x1000, scoped, tag = 'output window, operand 0, single buffered']
    %6 = vsyncpa [#allocation3], 0
    %7 = vsyncpa [#allocation4], 0
    // Predicated region
    $region2: #{tpu_custom_call.1} parent=1 // pred_check
      _
    $region3: #{tpu_custom_call.1} parent=1 // pred_check_branch
      %9 = sbr.rel (0) target = $region5
    $region4: #{tpu_custom_call.1} parent=1 // pred_region
      %s11 = ssub.s32 128, 128
      %12 = vsyncadd [#allocation3], %s11
      %s14 = sshll.u32 [#allocation2], 4
      %s15 = int_to_ptr.vmem [resolvable:$true] %s14
      %17 = dma.hbm_to_vmem [thread:$0]  %s0, 128, %s15, [#allocation3]
    $region5: #{tpu_custom_call.1} parent=1 // pred_fallthru
      _
    // Predicated region
    $region6: #{tpu_custom_call.1} parent=1 // pred_check
      _
    $region7: #{tpu_custom_call.1} parent=1 // pred_check_branch
      %19 = sbr.rel (0) target = $region9
    $region8: #{tpu_custom_call.1} parent=1 // pred_region
      %20 = dma.done [#allocation3], 128
    $region9: #{tpu_custom_call.1} parent=1 // pred_fallthru
      _
    %v21 = vld [vmem:[#allocation2] sm:$0xff]
    %22 = vrot.lane.b32.xlu0 %v21, 1
    %v23 = vpop.permute.xlu0 %22
    %24 = vst [vmem:[#allocation5] sm:$0xff] %v23
    // Predicated region
    $region10: #{tpu_custom_call.1} parent=1 // pred_check
      _
    $region11: #{tpu_custom_call.1} parent=1 // pred_check_branch
      %26 = sbr.rel (0) target = $region13
    $region12: #{tpu_custom_call.1} parent=1 // pred_region
      %s28 = ssub.s32 128, 128
      %29 = vsyncadd [#allocation4], %s28
      %s31 = sshll.u32 [#allocation5], 4
      %s32 = int_to_ptr.vmem [resolvable:$true] %s31
      %34 = dma.vmem_to_hbm [thread:$0]  %s32, 128, %s1, [#allocation4]
    $region13: #{tpu_custom_call.1} parent=1 // pred_fallthru
      _
    // Predicated region
    $region14: #{tpu_custom_call.1} parent=1 // pred_check
      _
    $region15: #{tpu_custom_call.1} parent=1 // pred_check_branch
      %36 = sbr.rel (0) target = $region17
    $region16: #{tpu_custom_call.1} parent=1 // pred_region
      %37 = dma.done [#allocation4], 128
    $region17: #{tpu_custom_call.1} parent=1 // pred_fallthru
      _
    %38 = vsyncpa [#allocation3], 1
    %39 = vsyncpa [#allocation4], 1

</llo_original>
